<compile_context>
chip_gen: v5e
topology: v5e:2x2
jax: 0.10.0
libtpu: 0.0.40
codegen_flags: <defaults>
</compile_context>

<pallas_src>
import jax
import jax.numpy as jnp
from jax.experimental import pallas as pl
from jax.experimental.pallas import tpu as pltpu

EPS = 1e-5  # PyTorch BatchNorm3d default eps


def _padded_bytes(shape, itemsize=4):
    """Padded VMEM bytes of an f32 ref: last two dims round up to (8, 128)."""
    lead = 1
    for d in shape[:-2]:
        lead *= int(d)
    sub = -(-int(shape[-2]) // 8) * 8
    lane = -(-int(shape[-1]) // 128) * 128
    return lead * sub * lane * itemsize


def _make_fused_kernel(K, C, Cout, eps):
    """Fused BN-stats + (BN folded) Conv3d(K,1,1) + tanh kernel body."""
    IDX_GAMMA, IDX_BETA, IDX_BIAS, IDX_W = 0, 1, 2, 3

    def _reduce_bp(x):
        # (B, C, HW) -> (1, C, 1): lane (pixel) reduce first, then batch adds.
        return jnp.sum(jnp.sum(x, axis=2, keepdims=True), axis=0, keepdims=True)

    def kernel(p_ref, *data_refs):
        x_refs = data_refs[:K]                       # K inputs, each (B, C, HW)
        o_ref = data_refs[K]                         # output, (B, Cout, HW)

        xs = [r[...] for r in x_refs]                # load once (tiny data)
        B, _, HW = xs[0].shape
        inv_n = 1.0 / float(K * B * HW)

        # ---- BatchNorm3d training-mode per-channel stats (two-pass) --------
        tot = xs[0]
        for k in range(1, K):
            tot = tot + xs[k]
        mean = _reduce_bp(tot) * inv_n               # (1, C, 1)

        ssq = None
        for k in range(K):
            d = xs[k] - mean
            dd = d * d
            ssq = dd if ssq is None else ssq + dd
        var = _reduce_bp(ssq) * inv_n                # biased variance, (1, C, 1)

        gamma = p_ref[IDX_GAMMA]                     # (C, 1)
        beta = p_ref[IDX_BETA]                       # (C, 1)
        scale = gamma / jnp.sqrt(var + eps)          # (1, C, 1)
        shift = beta - mean * scale                  # (1, C, 1)

        # ---- Conv3d(C->Cout, (K,1,1)) with BN folded into weights/bias -----
        # y_o = sum_{i,k} (w_oik * scale_i) * x_k[:, i, :]
        #       + sum_{i,k} w_oik * shift_i + bias_o ; then tanh.
        # Tiny (C*K = 8) contraction stays on the VPU/XLU, never the MXU.
        y_parts = []
        for o in range(Cout):
            acc = None                               # (B, 1, HW)
            bconst = None                            # (1, 1, 1)
            for k in range(K):
                w_vec = p_ref[IDX_W + o * K + k]     # (C, 1): raw w[o, :, k]
                t = jnp.sum((w_vec * scale) * xs[k], axis=1, keepdims=True)
                bk = jnp.sum(w_vec * shift, axis=1, keepdims=True)
                acc = t if acc is None else acc + t
                bconst = bk if bconst is None else bconst + bk
            y_parts.append(acc + bconst)

        y = jnp.concatenate(y_parts, axis=1)         # (B, Cout, HW)
        bias = p_ref[IDX_BIAS]                       # (Cout, 1)   (Cout == C)
        o_ref[...] = jnp.tanh(y + bias)              # single full-block store

    return kernel


def fused_bn_conv_tanh(xs, conv_w3, conv_b, gamma, beta, eps=EPS):
    """xs: list of K arrays (B, C, H, W). Returns (B, Cout, 1, H, W)."""
    K = len(xs)
    B, C, H, W = xs[0].shape
    HW = H * W
    Cout = conv_w3.shape[0]
    assert conv_w3.shape == (Cout, C, K)
    assert Cout == C, "param rows are packed with width C (FusionNet has Cout==C==2)"

    # Free reshapes only (contiguous trailing dims) -- no XLA transpose copies.
    xs_flat = [x.reshape(B, C, HW).astype(jnp.float32) for x in xs]

    # Single packed parameter block (one DMA descriptor instead of four);
    # row r holds a (C, 1) vector ready for sublane-broadcast:
    #   0: gamma, 1: beta, 2: bias, 3 + o*K + k: conv weights w[o, :, k].
    w_rows = jnp.transpose(conv_w3, (0, 2, 1)).reshape(Cout * K, C)
    pvec = jnp.concatenate(
        [gamma[None, :], beta[None, :], conv_b[None, :], w_rows], axis=0
    ).astype(jnp.float32)[..., None]                 # (3 + Cout*K, C, 1)

    # True padded VMEM footprint of all refs (inputs + output + params).
    ref_shapes = [x.shape for x in xs_flat] + [(B, Cout, HW), pvec.shape]
    footprint = sum(_padded_bytes(s) for s in ref_shapes)
    budget = 12 * 1024 * 1024  # safely under the 16 MiB v5e scoped-VMEM default
    # TODO(synk): when 8*footprint approaches the budget, switch to a pixel-axis
    # grid (stats pass + apply pass; reduction axis "arbitrary", pixel axis
    # "parallel") so v7x's 64 MiB VMEM and second TensorCore are handled/used.
    assert 8 * footprint < budget, "input too large for single-block kernel"
    vmem_limit = int(min(max(8 * footprint, 4 * 1024 * 1024), 32 * 1024 * 1024))

    vmem = lambda: pl.BlockSpec(memory_space=pltpu.MemorySpace.VMEM)

    out = pl.pallas_call(
        _make_fused_kernel(K=K, C=C, Cout=Cout, eps=eps),
        out_shape=jax.ShapeDtypeStruct((B, Cout, HW), jnp.float32),
        in_specs=[vmem()] + [vmem() for _ in range(K)],
        out_specs=vmem(),
        compiler_params=pltpu.CompilerParams(vmem_limit_bytes=vmem_limit),
    )(pvec, *xs_flat)

    return out.reshape(B, Cout, 1, H, W)


# ----------------------------------------------------------------------------
# FusionNet in JAX + Pallas
# ----------------------------------------------------------------------------
class FusionNetPallas:
    def __init__(self, data_h, data_w, use_ext, key):
        self.data_h = data_h
        self.data_w = data_w
        self.use_ext = use_ext
        self.K = 4 if use_ext else 3
        C = 2
        k1, k2 = jax.random.split(key)
        # Conv3d(2, 2, kernel_size=(K,1,1)) parameters, deterministic init.
        fan_in = C * self.K
        bound = 1.0 / jnp.sqrt(fan_in)
        self.conv_w = jax.random.uniform(k1, (C, C, self.K, 1, 1),
                                         jnp.float32, -bound, bound)
        self.conv_b = jax.random.uniform(k2, (C,), jnp.float32, -bound, bound)
        # BatchNorm3d(2) default affine init (weight=1, bias=0), training-mode
        # statistics (batch mean / biased batch var), matching a fresh module.
        self.bn_gamma = jnp.ones((C,), jnp.float32)
        self.bn_beta = jnp.zeros((C,), jnp.float32)

    def __call__(self, week, day, current, ext):
        parts = [week, day, current] + ([ext] if self.use_ext else [])
        conv_w3 = self.conv_w[:, :, :, 0, 0]              # (Cout, Cin, K)
        return fused_bn_conv_tanh(parts, conv_w3, self.conv_b,
                                  self.bn_gamma, self.bn_beta)


def reference_forward(mod, week, day, current, ext):
    """Pure-JAX reference matching the PyTorch forward (training-mode BN)."""
    parts = [week, day, current] + ([ext] if mod.use_ext else [])
    x = jnp.stack(parts, axis=2)                                # (B,2,K,H,W)
    mean = jnp.mean(x, axis=(0, 2, 3, 4), keepdims=True)
    var = jnp.var(x, axis=(0, 2, 3, 4), keepdims=True)          # biased
    g = mod.bn_gamma.reshape(1, 2, 1, 1, 1)
    b = mod.bn_beta.reshape(1, 2, 1, 1, 1)
    xn = (x - mean) / jnp.sqrt(var + EPS) * g + b
    w3 = mod.conv_w[:, :, :, 0, 0]                              # (Cout,Cin,K)
    y = jnp.einsum('oik,bikhw->bohw', w3, xn) + mod.conv_b.reshape(1, 2, 1, 1)
    return jnp.tanh(y)[:, :, None, :, :]


if __name__ == "__main__":
    B, DATA_H, DATA_W = 2, 16, 16
    USE_EXT = True

    key = jax.random.PRNGKey(0)
    k_mod, kw, kd, kc, ke = jax.random.split(key, 5)

    week = jax.random.normal(kw, (B, 2, DATA_H, DATA_W), jnp.float32)
    day = jax.random.normal(kd, (B, 2, DATA_H, DATA_W), jnp.float32)
    current = jax.random.normal(kc, (B, 2, DATA_H, DATA_W), jnp.float32)
    ext = jax.random.normal(ke, (B, 2, DATA_H, DATA_W), jnp.float32)

    model = FusionNetPallas(DATA_H, DATA_W, USE_EXT, k_mod)

    out = model(week, day, current, ext)
    out = jax.block_until_ready(out)

    ref = reference_forward(model, week, day, current, ext)
    assert out.shape == (B, 2, 1, DATA_H, DATA_W), out.shape
    assert jnp.allclose(out, ref, atol=1e-5, rtol=1e-5), \
        float(jnp.max(jnp.abs(out - ref)))

    print("KERNEL_OK")
</pallas_src>

<mosaic_0001>
module attributes {stable_mosaic.version = 11 : i64} {
  func.func @kernel(%arg0: memref<11x2x1xf32, #tpu.memory_space<vmem>>, %arg1: memref<2x2x256xf32, #tpu.memory_space<vmem>>, %arg2: memref<2x2x256xf32, #tpu.memory_space<vmem>>, %arg3: memref<2x2x256xf32, #tpu.memory_space<vmem>>, %arg4: memref<2x2x256xf32, #tpu.memory_space<vmem>>, %arg5: memref<2x2x256xf32, #tpu.memory_space<vmem>>) attributes {dimension_semantics = [], scalar_prefetch = 0 : i64, scratch_operands = 0 : i64, tpu.core_type = #tpu.core_type<tc>} {
    %c0 = arith.constant 0 : index
    %c0_0 = arith.constant 0 : index
    %c0_1 = arith.constant 0 : index
    %0 = vector.load %arg1[%c0, %c0_0, %c0_1] : memref<2x2x256xf32, #tpu.memory_space<vmem>>, vector<2x2x256xf32>
    %c0_2 = arith.constant 0 : index
    %c0_3 = arith.constant 0 : index
    %c0_4 = arith.constant 0 : index
    %1 = vector.load %arg2[%c0_2, %c0_3, %c0_4] : memref<2x2x256xf32, #tpu.memory_space<vmem>>, vector<2x2x256xf32>
    %c0_5 = arith.constant 0 : index
    %c0_6 = arith.constant 0 : index
    %c0_7 = arith.constant 0 : index
    %2 = vector.load %arg3[%c0_5, %c0_6, %c0_7] : memref<2x2x256xf32, #tpu.memory_space<vmem>>, vector<2x2x256xf32>
    %c0_8 = arith.constant 0 : index
    %c0_9 = arith.constant 0 : index
    %c0_10 = arith.constant 0 : index
    %3 = vector.load %arg4[%c0_8, %c0_9, %c0_10] : memref<2x2x256xf32, #tpu.memory_space<vmem>>, vector<2x2x256xf32>
    %4 = arith.addf %0, %1 : vector<2x2x256xf32>
    %5 = arith.addf %4, %2 : vector<2x2x256xf32>
    %6 = arith.addf %5, %3 : vector<2x2x256xf32>
    %cst = arith.constant dense<0.000000e+00> : vector<2x2xf32>
    %7 = vector.multi_reduction <add>, %6, %cst [2] : vector<2x2x256xf32> to vector<2x2xf32>
    %8 = vector.shape_cast %7 : vector<2x2xf32> to vector<2x2x1xf32>
    %cst_11 = arith.constant dense<0.000000e+00> : vector<2x1xf32>
    %9 = vector.multi_reduction <add>, %8, %cst_11 [0] : vector<2x2x1xf32> to vector<2x1xf32>
    %10 = vector.shape_cast %9 : vector<2x1xf32> to vector<1x2x1xf32>
    %cst_12 = arith.constant 4.8828125E-4 : f32
    %11 = vector.broadcast %cst_12 : f32 to vector<1x2x1xf32>
    %12 = arith.mulf %10, %11 : vector<1x2x1xf32>
    %13 = vector.broadcast %12 : vector<1x2x1xf32> to vector<2x2x256xf32>
    %14 = arith.subf %0, %13 : vector<2x2x256xf32>
    %15 = arith.mulf %14, %14 : vector<2x2x256xf32>
    %16 = vector.broadcast %12 : vector<1x2x1xf32> to vector<2x2x256xf32>
    %17 = arith.subf %1, %16 : vector<2x2x256xf32>
    %18 = arith.mulf %17, %17 : vector<2x2x256xf32>
    %19 = arith.addf %15, %18 : vector<2x2x256xf32>
    %20 = vector.broadcast %12 : vector<1x2x1xf32> to vector<2x2x256xf32>
    %21 = arith.subf %2, %20 : vector<2x2x256xf32>
    %22 = arith.mulf %21, %21 : vector<2x2x256xf32>
    %23 = arith.addf %19, %22 : vector<2x2x256xf32>
    %24 = vector.broadcast %12 : vector<1x2x1xf32> to vector<2x2x256xf32>
    %25 = arith.subf %3, %24 : vector<2x2x256xf32>
    %26 = arith.mulf %25, %25 : vector<2x2x256xf32>
    %27 = arith.addf %23, %26 : vector<2x2x256xf32>
    %cst_13 = arith.constant dense<0.000000e+00> : vector<2x2xf32>
    %28 = vector.multi_reduction <add>, %27, %cst_13 [2] : vector<2x2x256xf32> to vector<2x2xf32>
    %29 = vector.shape_cast %28 : vector<2x2xf32> to vector<2x2x1xf32>
    %cst_14 = arith.constant dense<0.000000e+00> : vector<2x1xf32>
    %30 = vector.multi_reduction <add>, %29, %cst_14 [0] : vector<2x2x1xf32> to vector<2x1xf32>
    %31 = vector.shape_cast %30 : vector<2x1xf32> to vector<1x2x1xf32>
    %cst_15 = arith.constant 4.8828125E-4 : f32
    %32 = vector.broadcast %cst_15 : f32 to vector<1x2x1xf32>
    %33 = arith.mulf %31, %32 : vector<1x2x1xf32>
    %c0_16 = arith.constant 0 : index
    %c0_17 = arith.constant 0 : index
    %c0_18 = arith.constant 0 : index
    %34 = vector.load %arg0[%c0_16, %c0_17, %c0_18] : memref<11x2x1xf32, #tpu.memory_space<vmem>>, vector<1x2x1xf32>
    %35 = vector.shape_cast %34 : vector<1x2x1xf32> to vector<2x1xf32>
    %c1 = arith.constant 1 : index
    %c0_19 = arith.constant 0 : index
    %c0_20 = arith.constant 0 : index
    %36 = vector.load %arg0[%c1, %c0_19, %c0_20] : memref<11x2x1xf32, #tpu.memory_space<vmem>>, vector<1x2x1xf32>
    %37 = vector.shape_cast %36 : vector<1x2x1xf32> to vector<2x1xf32>
    %cst_21 = arith.constant 9.99999974E-6 : f32
    %38 = vector.broadcast %cst_21 : f32 to vector<1x2x1xf32>
    %39 = arith.addf %33, %38 : vector<1x2x1xf32>
    %40 = math.sqrt %39 : vector<1x2x1xf32>
    %41 = vector.shape_cast %35 : vector<2x1xf32> to vector<1x2x1xf32>
    %42 = arith.divf %41, %40 : vector<1x2x1xf32>
    %43 = arith.mulf %12, %42 : vector<1x2x1xf32>
    %44 = vector.shape_cast %37 : vector<2x1xf32> to vector<1x2x1xf32>
    %45 = arith.subf %44, %43 : vector<1x2x1xf32>
    %c3 = arith.constant 3 : index
    %c0_22 = arith.constant 0 : index
    %c0_23 = arith.constant 0 : index
    %46 = vector.load %arg0[%c3, %c0_22, %c0_23] : memref<11x2x1xf32, #tpu.memory_space<vmem>>, vector<1x2x1xf32>
    %47 = vector.shape_cast %46 : vector<1x2x1xf32> to vector<2x1xf32>
    %48 = vector.shape_cast %47 : vector<2x1xf32> to vector<1x2x1xf32>
    %49 = arith.mulf %48, %42 : vector<1x2x1xf32>
    %50 = vector.broadcast %49 : vector<1x2x1xf32> to vector<2x2x256xf32>
    %51 = arith.mulf %50, %0 : vector<2x2x256xf32>
    %cst_24 = arith.constant dense<0.000000e+00> : vector<2x256xf32>
    %52 = vector.multi_reduction <add>, %51, %cst_24 [1] : vector<2x2x256xf32> to vector<2x256xf32>
    %53 = vector.shape_cast %52 : vector<2x256xf32> to vector<2x1x256xf32>
    %54 = vector.shape_cast %47 : vector<2x1xf32> to vector<1x2x1xf32>
    %55 = arith.mulf %54, %45 : vector<1x2x1xf32>
    %cst_25 = arith.constant dense<0.000000e+00> : vector<1x1xf32>
    %56 = vector.multi_reduction <add>, %55, %cst_25 [1] : vector<1x2x1xf32> to vector<1x1xf32>
    %57 = vector.shape_cast %56 : vector<1x1xf32> to vector<1x1x1xf32>
    %c4 = arith.constant 4 : index
    %c0_26 = arith.constant 0 : index
    %c0_27 = arith.constant 0 : index
    %58 = vector.load %arg0[%c4, %c0_26, %c0_27] : memref<11x2x1xf32, #tpu.memory_space<vmem>>, vector<1x2x1xf32>
    %59 = vector.shape_cast %58 : vector<1x2x1xf32> to vector<2x1xf32>
    %60 = vector.shape_cast %59 : vector<2x1xf32> to vector<1x2x1xf32>
    %61 = arith.mulf %60, %42 : vector<1x2x1xf32>
    %62 = vector.broadcast %61 : vector<1x2x1xf32> to vector<2x2x256xf32>
    %63 = arith.mulf %62, %1 : vector<2x2x256xf32>
    %cst_28 = arith.constant dense<0.000000e+00> : vector<2x256xf32>
    %64 = vector.multi_reduction <add>, %63, %cst_28 [1] : vector<2x2x256xf32> to vector<2x256xf32>
    %65 = vector.shape_cast %64 : vector<2x256xf32> to vector<2x1x256xf32>
    %66 = vector.shape_cast %59 : vector<2x1xf32> to vector<1x2x1xf32>
    %67 = arith.mulf %66, %45 : vector<1x2x1xf32>
    %cst_29 = arith.constant dense<0.000000e+00> : vector<1x1xf32>
    %68 = vector.multi_reduction <add>, %67, %cst_29 [1] : vector<1x2x1xf32> to vector<1x1xf32>
    %69 = vector.shape_cast %68 : vector<1x1xf32> to vector<1x1x1xf32>
    %70 = arith.addf %53, %65 : vector<2x1x256xf32>
    %71 = arith.addf %57, %69 : vector<1x1x1xf32>
    %c5 = arith.constant 5 : index
    %c0_30 = arith.constant 0 : index
    %c0_31 = arith.constant 0 : index
    %72 = vector.load %arg0[%c5, %c0_30, %c0_31] : memref<11x2x1xf32, #tpu.memory_space<vmem>>, vector<1x2x1xf32>
    %73 = vector.shape_cast %72 : vector<1x2x1xf32> to vector<2x1xf32>
    %74 = vector.shape_cast %73 : vector<2x1xf32> to vector<1x2x1xf32>
    %75 = arith.mulf %74, %42 : vector<1x2x1xf32>
    %76 = vector.broadcast %75 : vector<1x2x1xf32> to vector<2x2x256xf32>
    %77 = arith.mulf %76, %2 : vector<2x2x256xf32>
    %cst_32 = arith.constant dense<0.000000e+00> : vector<2x256xf32>
    %78 = vector.multi_reduction <add>, %77, %cst_32 [1] : vector<2x2x256xf32> to vector<2x256xf32>
    %79 = vector.shape_cast %78 : vector<2x256xf32> to vector<2x1x256xf32>
    %80 = vector.shape_cast %73 : vector<2x1xf32> to vector<1x2x1xf32>
    %81 = arith.mulf %80, %45 : vector<1x2x1xf32>
    %cst_33 = arith.constant dense<0.000000e+00> : vector<1x1xf32>
    %82 = vector.multi_reduction <add>, %81, %cst_33 [1] : vector<1x2x1xf32> to vector<1x1xf32>
    %83 = vector.shape_cast %82 : vector<1x1xf32> to vector<1x1x1xf32>
    %84 = arith.addf %70, %79 : vector<2x1x256xf32>
    %85 = arith.addf %71, %83 : vector<1x1x1xf32>
    %c6 = arith.constant 6 : index
    %c0_34 = arith.constant 0 : index
    %c0_35 = arith.constant 0 : index
    %86 = vector.load %arg0[%c6, %c0_34, %c0_35] : memref<11x2x1xf32, #tpu.memory_space<vmem>>, vector<1x2x1xf32>
    %87 = vector.shape_cast %86 : vector<1x2x1xf32> to vector<2x1xf32>
    %88 = vector.shape_cast %87 : vector<2x1xf32> to vector<1x2x1xf32>
    %89 = arith.mulf %88, %42 : vector<1x2x1xf32>
    %90 = vector.broadcast %89 : vector<1x2x1xf32> to vector<2x2x256xf32>
    %91 = arith.mulf %90, %3 : vector<2x2x256xf32>
    %cst_36 = arith.constant dense<0.000000e+00> : vector<2x256xf32>
    %92 = vector.multi_reduction <add>, %91, %cst_36 [1] : vector<2x2x256xf32> to vector<2x256xf32>
    %93 = vector.shape_cast %92 : vector<2x256xf32> to vector<2x1x256xf32>
    %94 = vector.shape_cast %87 : vector<2x1xf32> to vector<1x2x1xf32>
    %95 = arith.mulf %94, %45 : vector<1x2x1xf32>
    %cst_37 = arith.constant dense<0.000000e+00> : vector<1x1xf32>
    %96 = vector.multi_reduction <add>, %95, %cst_37 [1] : vector<1x2x1xf32> to vector<1x1xf32>
    %97 = vector.shape_cast %96 : vector<1x1xf32> to vector<1x1x1xf32>
    %98 = arith.addf %84, %93 : vector<2x1x256xf32>
    %99 = arith.addf %85, %97 : vector<1x1x1xf32>
    %100 = vector.broadcast %99 : vector<1x1x1xf32> to vector<2x1x256xf32>
    %101 = arith.addf %98, %100 : vector<2x1x256xf32>
    %c7 = arith.constant 7 : index
    %c0_38 = arith.constant 0 : index
    %c0_39 = arith.constant 0 : index
    %102 = vector.load %arg0[%c7, %c0_38, %c0_39] : memref<11x2x1xf32, #tpu.memory_space<vmem>>, vector<1x2x1xf32>
    %103 = vector.shape_cast %102 : vector<1x2x1xf32> to vector<2x1xf32>
    %104 = vector.shape_cast %103 : vector<2x1xf32> to vector<1x2x1xf32>
    %105 = arith.mulf %104, %42 : vector<1x2x1xf32>
    %106 = vector.broadcast %105 : vector<1x2x1xf32> to vector<2x2x256xf32>
    %107 = arith.mulf %106, %0 : vector<2x2x256xf32>
    %cst_40 = arith.constant dense<0.000000e+00> : vector<2x256xf32>
    %108 = vector.multi_reduction <add>, %107, %cst_40 [1] : vector<2x2x256xf32> to vector<2x256xf32>
    %109 = vector.shape_cast %108 : vector<2x256xf32> to vector<2x1x256xf32>
    %110 = vector.shape_cast %103 : vector<2x1xf32> to vector<1x2x1xf32>
    %111 = arith.mulf %110, %45 : vector<1x2x1xf32>
    %cst_41 = arith.constant dense<0.000000e+00> : vector<1x1xf32>
    %112 = vector.multi_reduction <add>, %111, %cst_41 [1] : vector<1x2x1xf32> to vector<1x1xf32>
    %113 = vector.shape_cast %112 : vector<1x1xf32> to vector<1x1x1xf32>
    %c8 = arith.constant 8 : index
    %c0_42 = arith.constant 0 : index
    %c0_43 = arith.constant 0 : index
    %114 = vector.load %arg0[%c8, %c0_42, %c0_43] : memref<11x2x1xf32, #tpu.memory_space<vmem>>, vector<1x2x1xf32>
    %115 = vector.shape_cast %114 : vector<1x2x1xf32> to vector<2x1xf32>
    %116 = vector.shape_cast %115 : vector<2x1xf32> to vector<1x2x1xf32>
    %117 = arith.mulf %116, %42 : vector<1x2x1xf32>
    %118 = vector.broadcast %117 : vector<1x2x1xf32> to vector<2x2x256xf32>
    %119 = arith.mulf %118, %1 : vector<2x2x256xf32>
    %cst_44 = arith.constant dense<0.000000e+00> : vector<2x256xf32>
    %120 = vector.multi_reduction <add>, %119, %cst_44 [1] : vector<2x2x256xf32> to vector<2x256xf32>
    %121 = vector.shape_cast %120 : vector<2x256xf32> to vector<2x1x256xf32>
    %122 = vector.shape_cast %115 : vector<2x1xf32> to vector<1x2x1xf32>
    %123 = arith.mulf %122, %45 : vector<1x2x1xf32>
    %cst_45 = arith.constant dense<0.000000e+00> : vector<1x1xf32>
    %124 = vector.multi_reduction <add>, %123, %cst_45 [1] : vector<1x2x1xf32> to vector<1x1xf32>
    %125 = vector.shape_cast %124 : vector<1x1xf32> to vector<1x1x1xf32>
    %126 = arith.addf %109, %121 : vector<2x1x256xf32>
    %127 = arith.addf %113, %125 : vector<1x1x1xf32>
    %c9 = arith.constant 9 : index
    %c0_46 = arith.constant 0 : index
    %c0_47 = arith.constant 0 : index
    %128 = vector.load %arg0[%c9, %c0_46, %c0_47] : memref<11x2x1xf32, #tpu.memory_space<vmem>>, vector<1x2x1xf32>
    %129 = vector.shape_cast %128 : vector<1x2x1xf32> to vector<2x1xf32>
    %130 = vector.shape_cast %129 : vector<2x1xf32> to vector<1x2x1xf32>
    %131 = arith.mulf %130, %42 : vector<1x2x1xf32>
    %132 = vector.broadcast %131 : vector<1x2x1xf32> to vector<2x2x256xf32>
    %133 = arith.mulf %132, %2 : vector<2x2x256xf32>
    %cst_48 = arith.constant dense<0.000000e+00> : vector<2x256xf32>
    %134 = vector.multi_reduction <add>, %133, %cst_48 [1] : vector<2x2x256xf32> to vector<2x256xf32>
    %135 = vector.shape_cast %134 : vector<2x256xf32> to vector<2x1x256xf32>
    %136 = vector.shape_cast %129 : vector<2x1xf32> to vector<1x2x1xf32>
    %137 = arith.mulf %136, %45 : vector<1x2x1xf32>
    %cst_49 = arith.constant dense<0.000000e+00> : vector<1x1xf32>
    %138 = vector.multi_reduction <add>, %137, %cst_49 [1] : vector<1x2x1xf32> to vector<1x1xf32>
    %139 = vector.shape_cast %138 : vector<1x1xf32> to vector<1x1x1xf32>
    %140 = arith.addf %126, %135 : vector<2x1x256xf32>
    %141 = arith.addf %127, %139 : vector<1x1x1xf32>
    %c10 = arith.constant 10 : index
    %c0_50 = arith.constant 0 : index
    %c0_51 = arith.constant 0 : index
    %142 = vector.load %arg0[%c10, %c0_50, %c0_51] : memref<11x2x1xf32, #tpu.memory_space<vmem>>, vector<1x2x1xf32>
    %143 = vector.shape_cast %142 : vector<1x2x1xf32> to vector<2x1xf32>
    %144 = vector.shape_cast %143 : vector<2x1xf32> to vector<1x2x1xf32>
    %145 = arith.mulf %144, %42 : vector<1x2x1xf32>
    %146 = vector.broadcast %145 : vector<1x2x1xf32> to vector<2x2x256xf32>
    %147 = arith.mulf %146, %3 : vector<2x2x256xf32>
    %cst_52 = arith.constant dense<0.000000e+00> : vector<2x256xf32>
    %148 = vector.multi_reduction <add>, %147, %cst_52 [1] : vector<2x2x256xf32> to vector<2x256xf32>
    %149 = vector.shape_cast %148 : vector<2x256xf32> to vector<2x1x256xf32>
    %150 = vector.shape_cast %143 : vector<2x1xf32> to vector<1x2x1xf32>
    %151 = arith.mulf %150, %45 : vector<1x2x1xf32>
    %cst_53 = arith.constant dense<0.000000e+00> : vector<1x1xf32>
    %152 = vector.multi_reduction <add>, %151, %cst_53 [1] : vector<1x2x1xf32> to vector<1x1xf32>
    %153 = vector.shape_cast %152 : vector<1x1xf32> to vector<1x1x1xf32>
    %154 = arith.addf %140, %149 : vector<2x1x256xf32>
    %155 = arith.addf %141, %153 : vector<1x1x1xf32>
    %156 = vector.broadcast %155 : vector<1x1x1xf32> to vector<2x1x256xf32>
    %157 = arith.addf %154, %156 : vector<2x1x256xf32>
    %158 = tpu.concatenate %101, %157 in 1 : vector<2x1x256xf32>, vector<2x1x256xf32> -> vector<2x2x256xf32>
    %c2 = arith.constant 2 : index
    %c0_54 = arith.constant 0 : index
    %c0_55 = arith.constant 0 : index
    %159 = vector.load %arg0[%c2, %c0_54, %c0_55] : memref<11x2x1xf32, #tpu.memory_space<vmem>>, vector<1x2x1xf32>
    %160 = vector.shape_cast %159 : vector<1x2x1xf32> to vector<2x1xf32>
    %161 = vector.shape_cast %160 : vector<2x1xf32> to vector<1x2x1xf32>
    %162 = vector.broadcast %161 : vector<1x2x1xf32> to vector<2x2x256xf32>
    %163 = arith.addf %158, %162 : vector<2x2x256xf32>
    %164 = math.tanh %163 : vector<2x2x256xf32>
    %c0_56 = arith.constant 0 : index
    %c0_57 = arith.constant 0 : index
    %c0_58 = arith.constant 0 : index
    %165 = vector.load %arg5[%c0_56, %c0_57, %c0_58] : memref<2x2x256xf32, #tpu.memory_space<vmem>>, vector<2x2x256xf32>
    tpu.vector_store %arg5[%c0_56, %c0_57, %c0_58], %164 {strides = array<i32>} : memref<2x2x256xf32, #tpu.memory_space<vmem>>, vector<2x2x256xf32>,
    return
  }
}

</mosaic_0001>

<llo_original>
// kernel: tpu_custom_call.1
$region0: #{tpu_custom_call.1}
  #allocation0 [shape = 'u32[]', space=smem, size = 0x4, offset = 0x4, fixed_abs, tag = 'smem constant byte address 0x4 - core index']
  #allocation1 [shape = 'u32[72,128]{1,0:T(1,128)}', space=vmem, size = 0x9000, scoped, tag = 'internal scratch']
  %s0 = inlined_call_operand.vmem [shape: f32[11,2,1], index: 0, kind: input, shape index: {}]
  %s1 = inlined_call_operand.vmem [shape: f32[2,2,256], index: 1, kind: input, shape index: {}]
  %s2 = inlined_call_operand.vmem [shape: f32[2,2,256], index: 2, kind: input, shape index: {}]
  %s3 = inlined_call_operand.vmem [shape: f32[2,2,256], index: 3, kind: input, shape index: {}]
  %s4 = inlined_call_operand.hbm [shape: f32[2,2,256], index: 4, kind: input, shape index: {}]
  %s5 = inlined_call_operand.hbm [shape: f32[2,2,256], index: 5, kind: output, shape index: {}]
  %s6 = sld [smem:[#allocation0]]
  $region34: #{tpu_custom_call.1} parent=0
    _
  %s8 = ssub.s32 1, %s6
  %s9 = scalar_select 0, %s8, %s6
  $region1: #{tpu_custom_call.1} parent=0
    #allocation2 [shape = 'u8[4096]{0}', space=vmem, size = 0x1000, scoped, tag = 'input window, operand 4, single buffered']
    #allocation3 [shape = 's32[1]{0}', space=sflag, size = 0x4, scoped, tag = 'scoped memory for tpu_custom_call.1']
    #allocation4 [shape = 's32[1]{0}', space=sflag, size = 0x4, scoped, tag = 'scoped memory for tpu_custom_call.1']
    #allocation5 [shape = 'u8[4096]{0}', space=vmem, size = 0x1000, scoped, tag = 'output window, operand 0, single buffered']
    %10 = vsyncpa [#allocation3], 0
    %11 = vsyncpa [#allocation4], 0
    // Predicated region
    $region2: #{tpu_custom_call.1} parent=1 // pred_check
      _
    $region3: #{tpu_custom_call.1} parent=1 // pred_check_branch
      %13 = sbr.rel (0) target = $region5
    $region4: #{tpu_custom_call.1} parent=1 // pred_region
      _
    $region5: #{tpu_custom_call.1} parent=1 // pred_fallthru
      _
    // Predicated region
    $region6: #{tpu_custom_call.1} parent=1 // pred_check
      _
    $region7: #{tpu_custom_call.1} parent=1 // pred_check_branch
      %15 = sbr.rel (0) target = $region9
    $region8: #{tpu_custom_call.1} parent=1 // pred_region
      _
    $region9: #{tpu_custom_call.1} parent=1 // pred_fallthru
      _
    // Predicated region
    $region10: #{tpu_custom_call.1} parent=1 // pred_check
      _
    $region11: #{tpu_custom_call.1} parent=1 // pred_check_branch
      %17 = sbr.rel (0) target = $region13
    $region12: #{tpu_custom_call.1} parent=1 // pred_region
      _
    $region13: #{tpu_custom_call.1} parent=1 // pred_fallthru
      _
    // Predicated region
    $region14: #{tpu_custom_call.1} parent=1 // pred_check
      _
    $region15: #{tpu_custom_call.1} parent=1 // pred_check_branch
      %19 = sbr.rel (0) target = $region17
    $region16: #{tpu_custom_call.1} parent=1 // pred_region
      _
    $region17: #{tpu_custom_call.1} parent=1 // pred_fallthru
      _
    // Predicated region
    $region18: #{tpu_custom_call.1} parent=1 // pred_check
      _
    $region19: #{tpu_custom_call.1} parent=1 // pred_check_branch
      %21 = sbr.rel (0) target = $region21
    $region20: #{tpu_custom_call.1} parent=1 // pred_region
      %23 = vsyncadd [#allocation3], 0
      %s24 = sshll.u32 %s4, 4
      %s25 = int_to_ptr.hbm [resolvable:$true] %s24
      %s26 = sshll.u32 [#allocation2], 4
      %s27 = int_to_ptr.vmem [resolvable:$true] %s26
      %32 = dma.hbm_to_vmem [thread:$0]  %s25, 128, %s27, [#allocation3], 64, 64, 4
    $region21: #{tpu_custom_call.1} parent=1 // pred_fallthru
      _
    // Predicated region
    $region22: #{tpu_custom_call.1} parent=1 // pred_check
      _
    $region23: #{tpu_custom_call.1} parent=1 // pred_check_branch
      %34 = sbr.rel (0) target = $region25
    $region24: #{tpu_custom_call.1} parent=1 // pred_region
      %36 = dma.done [#allocation3], 128
    $region25: #{tpu_custom_call.1} parent=1 // pred_fallthru
      _
    %v37 = vld [vmem:[%s1] sm:$0xf]
    %v38 = vld [vmem:[%s1 + $0x4] sm:$0xf]
    %v39 = vld [vmem:[%s2] sm:$0xf]
    %v40 = vld [vmem:[%s2 + $0x4] sm:$0xf]
    %v41 = vld [vmem:[%s3] sm:$0xf]
    %v42 = vld [vmem:[%s3 + $0x4] sm:$0xf]
    %v43 = vld [vmem:[#allocation2] sm:$0xf]
    %v44 = vld [vmem:[#allocation2 + $0x4] sm:$0xf]
    %v45 = vadd.f32 %v37, %v39
    %v46 = vadd.f32 %v38, %v40
    %v47 = vadd.f32 %v45, %v41
    %v48 = vadd.f32 %v46, %v42
    %v49 = vadd.f32 %v47, %v43
    %v50 = vadd.f32 %v48, %v44
    %53 = vst [vmem:[#allocation1] ss:$4 sm:$0xff] %v49
    %v54 = vld.sshfl [vmem:[#allocation1] sm:$0xff pattern:$0x73625140]
    %v55 = vld.sshfl [vmem:[#allocation1 + $0x8] sm:$0xff pattern:$0x73625140]
    %s56 = scalar_lea.vmem [#allocation1], 32
    %57 = vst [vmem:[%s56] ss:$4 sm:$0xff] %v50
    %v58 = vld.sshfl [vmem:[#allocation1 + $0x20] sm:$0xff pattern:$0x73625140]
    %v59 = vld.sshfl [vmem:[#allocation1 + $0x28] sm:$0xff pattern:$0x73625140]
    %vm64 = vcmask 1041408
    %v65 = vsel %vm64, %v54, 0.0
    %v66 = vsel %vm64, %v55, 0.0
    %v67 = vadd.f32 %v65, %v66
    %68 = vadd.xlane.f32.xlu0 %v67
    %v69 = vpop.xlane.xlu0 %68
    %v70 = vsel %vm64, %v58, 0.0
    %v71 = vsel %vm64, %v59, 0.0
    %v72 = vadd.f32 %v70, %v71
    %73 = vadd.xlane.f32.xlu0 %v72
    %v74 = vpop.xlane.xlu0 %73
    %v75 = vsel %vm64, %v69, 0.0
    %v76 = vsel %vm64, %v74, 0.0
    %v77 = vadd.f32 %v75, %v76
    %v78 = vmul.f32 %v77, 0.00048828125
    %v81 = vunpack.c.l.s4 269488144
    %v82 = vunpack.c.0.s8 %v81
    %v83 = vperm.slane %v78, %v82
    %v85 = vsub.f32 %v37, %v83
    %v86 = vsub.f32 %v38, %v83
    %v87 = vmul.f32 %v85, %v85
    %v88 = vmul.f32 %v86, %v86
    %v89 = vsub.f32 %v39, %v83
    %v90 = vsub.f32 %v40, %v83
    %v91 = vmul.f32 %v89, %v89
    %v92 = vmul.f32 %v90, %v90
    %v93 = vadd.f32 %v87, %v91
    %v94 = vadd.f32 %v88, %v92
    %v95 = vsub.f32 %v41, %v83
    %v96 = vsub.f32 %v42, %v83
    %v97 = vmul.f32 %v95, %v95
    %v98 = vmul.f32 %v96, %v96
    %v99 = vadd.f32 %v93, %v97
    %v100 = vadd.f32 %v94, %v98
    %v101 = vsub.f32 %v43, %v83
    %v102 = vsub.f32 %v44, %v83
    %v103 = vmul.f32 %v101, %v101
    %v104 = vmul.f32 %v102, %v102
    %v105 = vadd.f32 %v99, %v103
    %v106 = vadd.f32 %v100, %v104
    %109 = vst [vmem:[#allocation1] ss:$4 sm:$0xff] %v105
    %v110 = vld.sshfl [vmem:[#allocation1] sm:$0xff pattern:$0x73625140]
    %v111 = vld.sshfl [vmem:[#allocation1 + $0x8] sm:$0xff pattern:$0x73625140]
    %s112 = scalar_lea.vmem [#allocation1], 32
    %113 = vst [vmem:[%s112] ss:$4 sm:$0xff] %v106
    %v114 = vld.sshfl [vmem:[#allocation1 + $0x20] sm:$0xff pattern:$0x73625140]
    %v115 = vld.sshfl [vmem:[#allocation1 + $0x28] sm:$0xff pattern:$0x73625140]
    %v120 = vsel %vm64, %v110, 0.0
    %v121 = vsel %vm64, %v111, 0.0
    %v122 = vadd.f32 %v120, %v121
    %123 = vadd.xlane.f32.xlu0 %v122
    %v124 = vpop.xlane.xlu0 %123
    %v125 = vsel %vm64, %v114, 0.0
    %v126 = vsel %vm64, %v115, 0.0
    %v127 = vadd.f32 %v125, %v126
    %128 = vadd.xlane.f32.xlu0 %v127
    %v129 = vpop.xlane.xlu0 %128
    %v130 = vsel %vm64, %v124, 0.0
    %v131 = vsel %vm64, %v129, 0.0
    %v132 = vadd.f32 %v130, %v131
    %v133 = vmul.f32 %v132, 0.00048828125
    %v134 = vld [vmem:[%s0] sm:$0x3]
    %s135 = scalar_lea.vmem %s0, 2
    %v136 = vld [vmem:[%s135] sm:$0x3]
    %v137 = vadd.f32 %v133, 1e-05
    %v138 = vrsqrt.pop %v137
    %v139 = vmul.f32 %v138, %v137
    %v140 = vmul.f32 %v139, %v138
    %v141 = vmul.f32 0.5, %v140
    %v142 = vsub.f32 1.5, %v141
    %v143 = vmul.f32 %v138, %v142
    %v144 = vmul.f32 %v137, %v143
    %vm145 = vcmp.eq.f32.partialorder %v137, inf
    %v146 = vsel %vm145, %v137, %v144
    %vm147 = vcmp.eq.f32.partialorder %v137, 0.0
    %v148 = vand.u32 %v137, 2147483648
    %v149 = vsel %vm147, %v148, %v146
    %v150 = vrcp.pop %v149
    %v151 = vmul.f32 %v149, %v150
    %v152 = vsub.f32 1.0, %v151
    %v153 = vmul.f32 %v150, %v152
    %v154 = vadd.f32 %v150, %v153
    %vm155 = vweird.f32 %v149
    %vm156 = vweird.f32 %v150
    %vm157 = vmor %vm155, %vm156
    %v158 = vsel %vm157, %v150, %v154
    %v159 = vand.u32 2147483647, %v149
    %vm160 = vcmp.eq.f32.partialorder %v159, 8.507059e+37
    %v161 = vand.u32 %v149, 2147483648
    %v162 = vor.u32 1.1754944e-38, %v161
    %v163 = vsel %vm160, %v162, %v158
    %v164 = vmul.f32 %v134, %v163
    %v165 = vmul.f32 %v78, %v164
    %v166 = vsub.f32 %v136, %v165
    %s167 = scalar_lea.vmem %s0, 6
    %v168 = vld [vmem:[%s167] sm:$0x3]
    %v169 = vmul.f32 %v168, %v164
    %171 = vset.pattern.permute.xlu0 0
    %172 = vperm.xlu0 %171, %v169
    %v173 = vpop.permute.xlu0 %172
    %177 = vst [vmem:[#allocation1] ss:$4 sm:$0xff] %v37
    %v178 = vld.sshfl [vmem:[#allocation1] sm:$0xff pattern:$0x73625140]
    %v179 = vld.sshfl [vmem:[#allocation1 + $0x8] sm:$0xff pattern:$0x73625140]
    %s180 = scalar_lea.vmem [#allocation1], 32
    %181 = vst [vmem:[%s180] ss:$4 sm:$0xff] %v38
    %v182 = vld.sshfl [vmem:[#allocation1 + $0x20] sm:$0xff pattern:$0x73625140]
    %v183 = vld.sshfl [vmem:[#allocation1 + $0x28] sm:$0xff pattern:$0x73625140]
    %v188 = vmul.f32 %v173, %v178
    %v189 = vmul.f32 %v173, %v179
    %v190 = vmul.f32 %v173, %v182
    %v191 = vmul.f32 %v173, %v183
    %v192 = vsel %vm64, %v188, 0.0
    %v193 = vrot.slane %v192, 4
    %v194 = vadd.f32 %v192, %v193
    %v195 = vrot.slane %v194, 2
    %v196 = vadd.f32 %v194, %v195
    %v197 = vrot.slane %v196, 1
    %v198 = vadd.f32 %v196, %v197
    %v199 = vsel %vm64, %v189, 0.0
    %v200 = vrot.slane %v199, 4
    %v201 = vadd.f32 %v199, %v200
    %v202 = vrot.slane %v201, 2
    %v203 = vadd.f32 %v201, %v202
    %v204 = vrot.slane %v203, 1
    %v205 = vadd.f32 %v203, %v204
    %v206 = vsel %vm64, %v190, 0.0
    %v207 = vrot.slane %v206, 4
    %v208 = vadd.f32 %v206, %v207
    %v209 = vrot.slane %v208, 2
    %v210 = vadd.f32 %v208, %v209
    %v211 = vrot.slane %v210, 1
    %v212 = vadd.f32 %v210, %v211
    %v213 = vsel %vm64, %v191, 0.0
    %v214 = vrot.slane %v213, 4
    %v215 = vadd.f32 %v213, %v214
    %v216 = vrot.slane %v215, 2
    %v217 = vadd.f32 %v215, %v216
    %v218 = vrot.slane %v217, 1
    %v219 = vadd.f32 %v217, %v218
    %v220 = vmul.f32 %v168, %v166
    %vm221 = vcmask 1024
    %v222 = vsel %vm221, %v220, 0.0
    %v223 = vrot.slane %v222, 4
    %v224 = vadd.f32 %v222, %v223
    %v225 = vrot.slane %v224, 2
    %v226 = vadd.f32 %v224, %v225
    %v227 = vrot.slane %v226, 1
    %v228 = vadd.f32 %v226, %v227
    %s229 = scalar_lea.vmem %s0, 8
    %v230 = vld [vmem:[%s229] sm:$0x3]
    %v231 = vmul.f32 %v230, %v164
    %233 = vset.pattern.permute.xlu0 0
    %234 = vperm.xlu0 %233, %v231
    %v235 = vpop.permute.xlu0 %234
    %239 = vst [vmem:[#allocation1] ss:$4 sm:$0xff] %v39
    %v240 = vld.sshfl [vmem:[#allocation1] sm:$0xff pattern:$0x73625140]
    %v241 = vld.sshfl [vmem:[#allocation1 + $0x8] sm:$0xff pattern:$0x73625140]
    %s242 = scalar_lea.vmem [#allocation1], 32
    %243 = vst [vmem:[%s242] ss:$4 sm:$0xff] %v40
    %v244 = vld.sshfl [vmem:[#allocation1 + $0x20] sm:$0xff pattern:$0x73625140]
    %v245 = vld.sshfl [vmem:[#allocation1 + $0x28] sm:$0xff pattern:$0x73625140]
    %v250 = vmul.f32 %v235, %v240
    %v251 = vmul.f32 %v235, %v241
    %v252 = vmul.f32 %v235, %v244
    %v253 = vmul.f32 %v235, %v245
    %v254 = vsel %vm64, %v250, 0.0
    %v255 = vrot.slane %v254, 4
    %v256 = vadd.f32 %v254, %v255
    %v257 = vrot.slane %v256, 2
    %v258 = vadd.f32 %v256, %v257
    %v259 = vrot.slane %v258, 1
    %v260 = vadd.f32 %v258, %v259
    %v261 = vsel %vm64, %v251, 0.0
    %v262 = vrot.slane %v261, 4
    %v263 = vadd.f32 %v261, %v262
    %v264 = vrot.slane %v263, 2
    %v265 = vadd.f32 %v263, %v264
    %v266 = vrot.slane %v265, 1
    %v267 = vadd.f32 %v265, %v266
    %v268 = vsel %vm64, %v252, 0.0
    %v269 = vrot.slane %v268, 4
    %v270 = vadd.f32 %v268, %v269
    %v271 = vrot.slane %v270, 2
    %v272 = vadd.f32 %v270, %v271
    %v273 = vrot.slane %v272, 1
    %v274 = vadd.f32 %v272, %v273
    %v275 = vsel %vm64, %v253, 0.0
    %v276 = vrot.slane %v275, 4
    %v277 = vadd.f32 %v275, %v276
    %v278 = vrot.slane %v277, 2
    %v279 = vadd.f32 %v277, %v278
    %v280 = vrot.slane %v279, 1
    %v281 = vadd.f32 %v279, %v280
    %v282 = vmul.f32 %v230, %v166
    %v283 = vsel %vm221, %v282, 0.0
    %v284 = vrot.slane %v283, 4
    %v285 = vadd.f32 %v283, %v284
    %v286 = vrot.slane %v285, 2
    %v287 = vadd.f32 %v285, %v286
    %v288 = vrot.slane %v287, 1
    %v289 = vadd.f32 %v287, %v288
    %v290 = vadd.f32 %v198, %v260
    %v291 = vadd.f32 %v205, %v267
    %v292 = vadd.f32 %v212, %v274
    %v293 = vadd.f32 %v219, %v281
    %v294 = vadd.f32 %v228, %v289
    %s295 = scalar_lea.vmem %s0, 10
    %v296 = vld [vmem:[%s295] sm:$0x3]
    %v297 = vmul.f32 %v296, %v164
    %299 = vset.pattern.permute.xlu0 0
    %300 = vperm.xlu0 %299, %v297
    %v301 = vpop.permute.xlu0 %300
    %305 = vst [vmem:[#allocation1] ss:$4 sm:$0xff] %v41
    %v306 = vld.sshfl [vmem:[#allocation1] sm:$0xff pattern:$0x73625140]
    %v307 = vld.sshfl [vmem:[#allocation1 + $0x8] sm:$0xff pattern:$0x73625140]
    %s308 = scalar_lea.vmem [#allocation1], 32
    %309 = vst [vmem:[%s308] ss:$4 sm:$0xff] %v42
    %v310 = vld.sshfl [vmem:[#allocation1 + $0x20] sm:$0xff pattern:$0x73625140]
    %v311 = vld.sshfl [vmem:[#allocation1 + $0x28] sm:$0xff pattern:$0x73625140]
    %v316 = vmul.f32 %v301, %v306
    %v317 = vmul.f32 %v301, %v307
    %v318 = vmul.f32 %v301, %v310
    %v319 = vmul.f32 %v301, %v311
    %v320 = vsel %vm64, %v316, 0.0
    %v321 = vrot.slane %v320, 4
    %v322 = vadd.f32 %v320, %v321
    %v323 = vrot.slane %v322, 2
    %v324 = vadd.f32 %v322, %v323
    %v325 = vrot.slane %v324, 1
    %v326 = vadd.f32 %v324, %v325
    %v327 = vsel %vm64, %v317, 0.0
    %v328 = vrot.slane %v327, 4
    %v329 = vadd.f32 %v327, %v328
    %v330 = vrot.slane %v329, 2
    %v331 = vadd.f32 %v329, %v330
    %v332 = vrot.slane %v331, 1
    %v333 = vadd.f32 %v331, %v332
    %v334 = vsel %vm64, %v318, 0.0
    %v335 = vrot.slane %v334, 4
    %v336 = vadd.f32 %v334, %v335
    %v337 = vrot.slane %v336, 2
    %v338 = vadd.f32 %v336, %v337
    %v339 = vrot.slane %v338, 1
    %v340 = vadd.f32 %v338, %v339
    %v341 = vsel %vm64, %v319, 0.0
    %v342 = vrot.slane %v341, 4
    %v343 = vadd.f32 %v341, %v342
    %v344 = vrot.slane %v343, 2
    %v345 = vadd.f32 %v343, %v344
    %v346 = vrot.slane %v345, 1
    %v347 = vadd.f32 %v345, %v346
    %v348 = vmul.f32 %v296, %v166
    %v349 = vsel %vm221, %v348, 0.0
    %v350 = vrot.slane %v349, 4
    %v351 = vadd.f32 %v349, %v350
    %v352 = vrot.slane %v351, 2
    %v353 = vadd.f32 %v351, %v352
    %v354 = vrot.slane %v353, 1
    %v355 = vadd.f32 %v353, %v354
    %v356 = vadd.f32 %v290, %v326
    %v357 = vadd.f32 %v291, %v333
    %v358 = vadd.f32 %v292, %v340
    %v359 = vadd.f32 %v293, %v347
    %v360 = vadd.f32 %v294, %v355
    %s361 = scalar_lea.vmem %s0, 12
    %v362 = vld [vmem:[%s361] sm:$0x3]
    %v363 = vmul.f32 %v362, %v164
    %365 = vset.pattern.permute.xlu0 0
    %366 = vperm.xlu0 %365, %v363
    %v367 = vpop.permute.xlu0 %366
    %371 = vst [vmem:[#allocation1] ss:$4 sm:$0xff] %v43
    %v372 = vld.sshfl [vmem:[#allocation1] sm:$0xff pattern:$0x73625140]
    %v373 = vld.sshfl [vmem:[#allocation1 + $0x8] sm:$0xff pattern:$0x73625140]
    %s374 = scalar_lea.vmem [#allocation1], 32
    %375 = vst [vmem:[%s374] ss:$4 sm:$0xff] %v44
    %v376 = vld.sshfl [vmem:[#allocation1 + $0x20] sm:$0xff pattern:$0x73625140]
    %v377 = vld.sshfl [vmem:[#allocation1 + $0x28] sm:$0xff pattern:$0x73625140]
    %v382 = vmul.f32 %v367, %v372
    %v383 = vmul.f32 %v367, %v373
    %v384 = vmul.f32 %v367, %v376
    %v385 = vmul.f32 %v367, %v377
    %v386 = vsel %vm64, %v382, 0.0
    %v387 = vrot.slane %v386, 4
    %v388 = vadd.f32 %v386, %v387
    %v389 = vrot.slane %v388, 2
    %v390 = vadd.f32 %v388, %v389
    %v391 = vrot.slane %v390, 1
    %v392 = vadd.f32 %v390, %v391
    %v393 = vsel %vm64, %v383, 0.0
    %v394 = vrot.slane %v393, 4
    %v395 = vadd.f32 %v393, %v394
    %v396 = vrot.slane %v395, 2
    %v397 = vadd.f32 %v395, %v396
    %v398 = vrot.slane %v397, 1
    %v399 = vadd.f32 %v397, %v398
    %v400 = vsel %vm64, %v384, 0.0
    %v401 = vrot.slane %v400, 4
    %v402 = vadd.f32 %v400, %v401
    %v403 = vrot.slane %v402, 2
    %v404 = vadd.f32 %v402, %v403
    %v405 = vrot.slane %v404, 1
    %v406 = vadd.f32 %v404, %v405
    %v407 = vsel %vm64, %v385, 0.0
    %v408 = vrot.slane %v407, 4
    %v409 = vadd.f32 %v407, %v408
    %v410 = vrot.slane %v409, 2
    %v411 = vadd.f32 %v409, %v410
    %v412 = vrot.slane %v411, 1
    %v413 = vadd.f32 %v411, %v412
    %v414 = vmul.f32 %v362, %v166
    %v415 = vsel %vm221, %v414, 0.0
    %v416 = vrot.slane %v415, 4
    %v417 = vadd.f32 %v415, %v416
    %v418 = vrot.slane %v417, 2
    %v419 = vadd.f32 %v417, %v418
    %v420 = vrot.slane %v419, 1
    %v421 = vadd.f32 %v419, %v420
    %v422 = vadd.f32 %v356, %v392
    %v423 = vadd.f32 %v357, %v399
    %v424 = vadd.f32 %v358, %v406
    %v425 = vadd.f32 %v359, %v413
    %v426 = vadd.f32 %v360, %v421
    %428 = vset.pattern.permute.xlu0 0
    %429 = vperm.xlu0 %428, %v426
    %v430 = vpop.permute.xlu0 %429
    %v432 = vadd.f32 %v422, %v430
    %v433 = vadd.f32 %v423, %v430
    %v434 = vadd.f32 %v424, %v430
    %v435 = vadd.f32 %v425, %v430
    %s436 = scalar_lea.vmem %s0, 14
    %v437 = vld [vmem:[%s436] sm:$0x3]
    %v438 = vmul.f32 %v437, %v164
    %440 = vset.pattern.permute.xlu0 0
    %441 = vperm.xlu0 %440, %v438
    %v442 = vpop.permute.xlu0 %441
    %444 = vst [vmem:[#allocation1] ss:$4 sm:$0xff] %v37
    %v445 = vld.sshfl [vmem:[#allocation1] sm:$0xff pattern:$0x73625140]
    %v446 = vld.sshfl [vmem:[#allocation1 + $0x8] sm:$0xff pattern:$0x73625140]
    %s447 = scalar_lea.vmem [#allocation1], 32
    %448 = vst [vmem:[%s447] ss:$4 sm:$0xff] %v38
    %v449 = vld.sshfl [vmem:[#allocation1 + $0x20] sm:$0xff pattern:$0x73625140]
    %v450 = vld.sshfl [vmem:[#allocation1 + $0x28] sm:$0xff pattern:$0x73625140]
    %v455 = vmul.f32 %v442, %v445
    %v456 = vmul.f32 %v442, %v446
    %v457 = vmul.f32 %v442, %v449
    %v458 = vmul.f32 %v442, %v450
    %v459 = vsel %vm64, %v455, 0.0
    %v460 = vrot.slane %v459, 4
    %v461 = vadd.f32 %v459, %v460
    %v462 = vrot.slane %v461, 2
    %v463 = vadd.f32 %v461, %v462
    %v464 = vrot.slane %v463, 1
    %v465 = vadd.f32 %v463, %v464
    %v466 = vsel %vm64, %v456, 0.0
    %v467 = vrot.slane %v466, 4
    %v468 = vadd.f32 %v466, %v467
    %v469 = vrot.slane %v468, 2
    %v470 = vadd.f32 %v468, %v469
    %v471 = vrot.slane %v470, 1
    %v472 = vadd.f32 %v470, %v471
    %v473 = vsel %vm64, %v457, 0.0
    %v474 = vrot.slane %v473, 4
    %v475 = vadd.f32 %v473, %v474
    %v476 = vrot.slane %v475, 2
    %v477 = vadd.f32 %v475, %v476
    %v478 = vrot.slane %v477, 1
    %v479 = vadd.f32 %v477, %v478
    %v480 = vsel %vm64, %v458, 0.0
    %v481 = vrot.slane %v480, 4
    %v482 = vadd.f32 %v480, %v481
    %v483 = vrot.slane %v482, 2
    %v484 = vadd.f32 %v482, %v483
    %v485 = vrot.slane %v484, 1
    %v486 = vadd.f32 %v484, %v485
    %v487 = vmul.f32 %v437, %v166
    %v488 = vsel %vm221, %v487, 0.0
    %v489 = vrot.slane %v488, 4
    %v490 = vadd.f32 %v488, %v489
    %v491 = vrot.slane %v490, 2
    %v492 = vadd.f32 %v490, %v491
    %v493 = vrot.slane %v492, 1
    %v494 = vadd.f32 %v492, %v493
    %s495 = scalar_lea.vmem %s0, 16
    %v496 = vld [vmem:[%s495] sm:$0x3]
    %v497 = vmul.f32 %v496, %v164
    %499 = vset.pattern.permute.xlu0 0
    %500 = vperm.xlu0 %499, %v497
    %v501 = vpop.permute.xlu0 %500
    %503 = vst [vmem:[#allocation1] ss:$4 sm:$0xff] %v39
    %v504 = vld.sshfl [vmem:[#allocation1] sm:$0xff pattern:$0x73625140]
    %v505 = vld.sshfl [vmem:[#allocation1 + $0x8] sm:$0xff pattern:$0x73625140]
    %s506 = scalar_lea.vmem [#allocation1], 32
    %507 = vst [vmem:[%s506] ss:$4 sm:$0xff] %v40
    %v508 = vld.sshfl [vmem:[#allocation1 + $0x20] sm:$0xff pattern:$0x73625140]
    %v509 = vld.sshfl [vmem:[#allocation1 + $0x28] sm:$0xff pattern:$0x73625140]
    %v514 = vmul.f32 %v501, %v504
    %v515 = vmul.f32 %v501, %v505
    %v516 = vmul.f32 %v501, %v508
    %v517 = vmul.f32 %v501, %v509
    %v518 = vsel %vm64, %v514, 0.0
    %v519 = vrot.slane %v518, 4
    %v520 = vadd.f32 %v518, %v519
    %v521 = vrot.slane %v520, 2
    %v522 = vadd.f32 %v520, %v521
    %v523 = vrot.slane %v522, 1
    %v524 = vadd.f32 %v522, %v523
    %v525 = vsel %vm64, %v515, 0.0
    %v526 = vrot.slane %v525, 4
    %v527 = vadd.f32 %v525, %v526
    %v528 = vrot.slane %v527, 2
    %v529 = vadd.f32 %v527, %v528
    %v530 = vrot.slane %v529, 1
    %v531 = vadd.f32 %v529, %v530
    %v532 = vsel %vm64, %v516, 0.0
    %v533 = vrot.slane %v532, 4
    %v534 = vadd.f32 %v532, %v533
    %v535 = vrot.slane %v534, 2
    %v536 = vadd.f32 %v534, %v535
    %v537 = vrot.slane %v536, 1
    %v538 = vadd.f32 %v536, %v537
    %v539 = vsel %vm64, %v517, 0.0
    %v540 = vrot.slane %v539, 4
    %v541 = vadd.f32 %v539, %v540
    %v542 = vrot.slane %v541, 2
    %v543 = vadd.f32 %v541, %v542
    %v544 = vrot.slane %v543, 1
    %v545 = vadd.f32 %v543, %v544
    %v546 = vmul.f32 %v496, %v166
    %v547 = vsel %vm221, %v546, 0.0
    %v548 = vrot.slane %v547, 4
    %v549 = vadd.f32 %v547, %v548
    %v550 = vrot.slane %v549, 2
    %v551 = vadd.f32 %v549, %v550
    %v552 = vrot.slane %v551, 1
    %v553 = vadd.f32 %v551, %v552
    %v554 = vadd.f32 %v465, %v524
    %v555 = vadd.f32 %v472, %v531
    %v556 = vadd.f32 %v479, %v538
    %v557 = vadd.f32 %v486, %v545
    %v558 = vadd.f32 %v494, %v553
    %s559 = scalar_lea.vmem %s0, 18
    %v560 = vld [vmem:[%s559] sm:$0x3]
    %v561 = vmul.f32 %v560, %v164
    %563 = vset.pattern.permute.xlu0 0
    %564 = vperm.xlu0 %563, %v561
    %v565 = vpop.permute.xlu0 %564
    %567 = vst [vmem:[#allocation1] ss:$4 sm:$0xff] %v41
    %v568 = vld.sshfl [vmem:[#allocation1] sm:$0xff pattern:$0x73625140]
    %v569 = vld.sshfl [vmem:[#allocation1 + $0x8] sm:$0xff pattern:$0x73625140]
    %s570 = scalar_lea.vmem [#allocation1], 32
    %571 = vst [vmem:[%s570] ss:$4 sm:$0xff] %v42
    %v572 = vld.sshfl [vmem:[#allocation1 + $0x20] sm:$0xff pattern:$0x73625140]
    %v573 = vld.sshfl [vmem:[#allocation1 + $0x28] sm:$0xff pattern:$0x73625140]
    %v578 = vmul.f32 %v565, %v568
    %v579 = vmul.f32 %v565, %v569
    %v580 = vmul.f32 %v565, %v572
    %v581 = vmul.f32 %v565, %v573
    %v582 = vsel %vm64, %v578, 0.0
    %v583 = vrot.slane %v582, 4
    %v584 = vadd.f32 %v582, %v583
    %v585 = vrot.slane %v584, 2
    %v586 = vadd.f32 %v584, %v585
    %v587 = vrot.slane %v586, 1
    %v588 = vadd.f32 %v586, %v587
    %v589 = vsel %vm64, %v579, 0.0
    %v590 = vrot.slane %v589, 4
    %v591 = vadd.f32 %v589, %v590
    %v592 = vrot.slane %v591, 2
    %v593 = vadd.f32 %v591, %v592
    %v594 = vrot.slane %v593, 1
    %v595 = vadd.f32 %v593, %v594
    %v596 = vsel %vm64, %v580, 0.0
    %v597 = vrot.slane %v596, 4
    %v598 = vadd.f32 %v596, %v597
    %v599 = vrot.slane %v598, 2
    %v600 = vadd.f32 %v598, %v599
    %v601 = vrot.slane %v600, 1
    %v602 = vadd.f32 %v600, %v601
    %v603 = vsel %vm64, %v581, 0.0
    %v604 = vrot.slane %v603, 4
    %v605 = vadd.f32 %v603, %v604
    %v606 = vrot.slane %v605, 2
    %v607 = vadd.f32 %v605, %v606
    %v608 = vrot.slane %v607, 1
    %v609 = vadd.f32 %v607, %v608
    %v610 = vmul.f32 %v560, %v166
    %v611 = vsel %vm221, %v610, 0.0
    %v612 = vrot.slane %v611, 4
    %v613 = vadd.f32 %v611, %v612
    %v614 = vrot.slane %v613, 2
    %v615 = vadd.f32 %v613, %v614
    %v616 = vrot.slane %v615, 1
    %v617 = vadd.f32 %v615, %v616
    %v618 = vadd.f32 %v554, %v588
    %v619 = vadd.f32 %v555, %v595
    %v620 = vadd.f32 %v556, %v602
    %v621 = vadd.f32 %v557, %v609
    %v622 = vadd.f32 %v558, %v617
    %s623 = scalar_lea.vmem %s0, 20
    %v624 = vld [vmem:[%s623] sm:$0x3]
    %v625 = vmul.f32 %v624, %v164
    %627 = vset.pattern.permute.xlu0 0
    %628 = vperm.xlu0 %627, %v625
    %v629 = vpop.permute.xlu0 %628
    %631 = vst [vmem:[#allocation1] ss:$4 sm:$0xff] %v43
    %v632 = vld.sshfl [vmem:[#allocation1] sm:$0xff pattern:$0x73625140]
    %v633 = vld.sshfl [vmem:[#allocation1 + $0x8] sm:$0xff pattern:$0x73625140]
    %s634 = scalar_lea.vmem [#allocation1], 32
    %635 = vst [vmem:[%s634] ss:$4 sm:$0xff] %v44
    %v636 = vld.sshfl [vmem:[#allocation1 + $0x20] sm:$0xff pattern:$0x73625140]
    %v637 = vld.sshfl [vmem:[#allocation1 + $0x28] sm:$0xff pattern:$0x73625140]
    %v642 = vmul.f32 %v629, %v632
    %v643 = vmul.f32 %v629, %v633
    %v644 = vmul.f32 %v629, %v636
    %v645 = vmul.f32 %v629, %v637
    %v646 = vsel %vm64, %v642, 0.0
    %v647 = vrot.slane %v646, 4
    %v648 = vadd.f32 %v646, %v647
    %v649 = vrot.slane %v648, 2
    %v650 = vadd.f32 %v648, %v649
    %v651 = vrot.slane %v650, 1
    %v652 = vadd.f32 %v650, %v651
    %v653 = vsel %vm64, %v643, 0.0
    %v654 = vrot.slane %v653, 4
    %v655 = vadd.f32 %v653, %v654
    %v656 = vrot.slane %v655, 2
    %v657 = vadd.f32 %v655, %v656
    %v658 = vrot.slane %v657, 1
    %v659 = vadd.f32 %v657, %v658
    %v660 = vsel %vm64, %v644, 0.0
    %v661 = vrot.slane %v660, 4
    %v662 = vadd.f32 %v660, %v661
    %v663 = vrot.slane %v662, 2
    %v664 = vadd.f32 %v662, %v663
    %v665 = vrot.slane %v664, 1
    %v666 = vadd.f32 %v664, %v665
    %v667 = vsel %vm64, %v645, 0.0
    %v668 = vrot.slane %v667, 4
    %v669 = vadd.f32 %v667, %v668
    %v670 = vrot.slane %v669, 2
    %v671 = vadd.f32 %v669, %v670
    %v672 = vrot.slane %v671, 1
    %v673 = vadd.f32 %v671, %v672
    %v674 = vmul.f32 %v624, %v166
    %v675 = vsel %vm221, %v674, 0.0
    %v676 = vrot.slane %v675, 4
    %v677 = vadd.f32 %v675, %v676
    %v678 = vrot.slane %v677, 2
    %v679 = vadd.f32 %v677, %v678
    %v680 = vrot.slane %v679, 1
    %v681 = vadd.f32 %v679, %v680
    %v682 = vadd.f32 %v618, %v652
    %v683 = vadd.f32 %v619, %v659
    %v684 = vadd.f32 %v620, %v666
    %v685 = vadd.f32 %v621, %v673
    %v686 = vadd.f32 %v622, %v681
    %688 = vset.pattern.permute.xlu0 0
    %689 = vperm.xlu0 %688, %v686
    %v690 = vpop.permute.xlu0 %689
    %v692 = vadd.f32 %v682, %v690
    %v693 = vadd.f32 %v683, %v690
    %v694 = vadd.f32 %v684, %v690
    %v695 = vadd.f32 %v685, %v690
    %vm696 = vcmask 1040384
    %v697 = vsel %vm696, %v432, %v692
    %v698 = vsel %vm696, %v433, %v693
    %v699 = vsel %vm696, %v434, %v694
    %v700 = vsel %vm696, %v435, %v695
    %s701 = scalar_lea.vmem %s0, 4
    %v702 = vld [vmem:[%s701] sm:$0x3]
    %704 = vset.pattern.permute.xlu0 0
    %705 = vperm.xlu0 %704, %v702
    %v706 = vpop.permute.xlu0 %705
    %v708 = vadd.f32 %v697, %v706
    %v709 = vadd.f32 %v698, %v706
    %v710 = vadd.f32 %v699, %v706
    %v711 = vadd.f32 %v700, %v706
    %v712 = vtanh.pop %v708
    %v713 = vtanh.pop %v709
    %v714 = vtanh.pop %v710
    %v715 = vtanh.pop %v711
    %v720 = vrot.slane %v713, 6
    %v721 = vrot.slane %v715, 6
    %v722 = vsel %vm64, %v712, %v720
    %v723 = vsel %vm64, %v714, %v721
    %726 = vst [vmem:[#allocation5] sm:$0xf] %v722
    %727 = vst [vmem:[#allocation5 + $0x4] sm:$0xf] %v723
    // Predicated region
    $region26: #{tpu_custom_call.1} parent=1 // pred_check
      _
    $region27: #{tpu_custom_call.1} parent=1 // pred_check_branch
      %729 = sbr.rel (0) target = $region29
    $region28: #{tpu_custom_call.1} parent=1 // pred_region
      %731 = vsyncadd [#allocation4], 0
      %s732 = sshll.u32 [#allocation5], 4
      %s733 = int_to_ptr.vmem [resolvable:$true] %s732
      %s734 = sshll.u32 %s5, 4
      %s735 = int_to_ptr.hbm [resolvable:$true] %s734
      %740 = dma.vmem_to_hbm [thread:$0]  %s733, 128, %s735, [#allocation4], 64, 64, 4
    $region29: #{tpu_custom_call.1} parent=1 // pred_fallthru
      _
    // Predicated region
    $region30: #{tpu_custom_call.1} parent=1 // pred_check
      _
    $region31: #{tpu_custom_call.1} parent=1 // pred_check_branch
      %742 = sbr.rel (0) target = $region33
    $region32: #{tpu_custom_call.1} parent=1 // pred_region
      %744 = dma.done [#allocation4], 128
    $region33: #{tpu_custom_call.1} parent=1 // pred_fallthru
      _
    %745 = vsyncpa [#allocation3], 1
    %746 = vsyncpa [#allocation4], 1

</llo_original>
